<compile_context>
chip_gen: v7x
topology: tpu7x:2x2x1
jax: 0.10.0
libtpu: 0.0.40
codegen_flags: <defaults>
</compile_context>

<pallas_src>
import jax
import jax.numpy as jnp
from jax.experimental import pallas as pl
from jax.experimental.pallas import tpu as pltpu


def _round_up(n, m):
    return ((n + m - 1) // m) * m


def rbf_network_kernel(x_ref, cbd_ref, msk_ref, csq_ref, nsig2_ref, wt_ref, b_ref, out_ref):
    """One batch tile of the fused RBF-network forward.

    x_ref     : [TB, F]  activations (f32)
    cbd_ref   : [F,  H]  -2 * block-diagonal centres (transposed), all layers fused
    msk_ref   : [F,  H]  0/1 feature->layer membership mask
    csq_ref   : [1,  H]  ||centre_h||^2
    nsig2_ref : [1,  H]  -(sigma_h^2)
    wt_ref    : [H,  C]  classifier weight, pre-transposed
    b_ref     : [1,  C]  classifier bias
    out_ref   : [TB, C]
    """
    x = x_ref[...]                                                            # [TB, F]
    # Cross term for *all* RBF layers in a single MXU matmul (K = F_total).
    xc = jnp.dot(x, cbd_ref[...], preferred_element_type=jnp.float32)        # [TB, H]
    # Per-layer ||x_slice||^2, broadcast to each hidden column of its layer.
    xsq = jnp.dot(x * x, msk_ref[...], preferred_element_type=jnp.float32)   # [TB, H]
    # ||x - c||^2 = ||x_slice||^2 - 2 x.c + ||c||^2   (clamped for cancellation)
    d2 = jnp.maximum(xsq + xc + csq_ref[...], 0.0)                            # [TB, H]
    # gaussian(sigma * ||x - c||) = exp(-(sigma^2) * ||x - c||^2)
    phi = jnp.exp(nsig2_ref[...] * d2)                                        # [TB, H]
    out_ref[...] = (
        jnp.dot(phi, wt_ref[...], preferred_element_type=jnp.float32) + b_ref[...]
    )


def prepare_params(centres_list, sigmas_list, w_cls, b_cls):
    """Pack per-layer RBF parameters + classifier into fused, pre-transposed
    weight-derived constants (paid once per weight set, outside the kernel)."""
    assert len(centres_list) == len(sigmas_list), "one sigma vector per RBF layer"
    for c, s in zip(centres_list, sigmas_list):
        assert s.shape == (c.shape[0],), "sigmas must have shape [n_hidden] per layer"

    n_feats = [c.shape[1] for c in centres_list]
    n_hids = [c.shape[0] for c in centres_list]
    F, H = sum(n_feats), sum(n_hids)

    cbd = jnp.zeros((F, H), jnp.float32)   # -2 * block-diagonal centres^T
    msk = jnp.zeros((F, H), jnp.float32)   # feature -> layer membership (0/1)
    f0 = h0 = 0
    for c in centres_list:
        fi, hi = c.shape[1], c.shape[0]
        cbd = cbd.at[f0:f0 + fi, h0:h0 + hi].set(-2.0 * c.T.astype(jnp.float32))
        msk = msk.at[f0:f0 + fi, h0:h0 + hi].set(1.0)
        f0 += fi
        h0 += hi

    csq = jnp.concatenate([jnp.sum(c * c, axis=1) for c in centres_list])[None, :]
    nsig2 = jnp.concatenate([-(s * s) for s in sigmas_list])[None, :]
    wt = jnp.asarray(w_cls).T                       # [H, C] pre-transposed classifier weight
    b = jnp.asarray(b_cls).reshape(1, -1)           # [1, C]

    return (cbd, msk,
            csq.astype(jnp.float32), nsig2.astype(jnp.float32),
            wt.astype(jnp.float32), b.astype(jnp.float32))


def rbf_network_forward(x, params, *, tb=512):
    """Fused RBF network forward via one Pallas kernel, batch-tiled over a grid."""
    cbd, msk, csq, nsig2, wt, b = params
    B, F = x.shape
    assert cbd.shape[0] == F, "x feature dim must equal sum(n_features)"
    C = wt.shape[1]

    # Batch tile: (8,128)-friendly, capped at the (padded) batch size.
    tb = max(8, min(_round_up(tb, 8), _round_up(B, 8)))
    b_pad = _round_up(B, tb)
    if b_pad != B:
        x = jnp.pad(x, ((0, b_pad - B), (0, 0)))

    grid = (b_pad // tb,)

    def full_spec(arr):
        return pl.BlockSpec(arr.shape, lambda i: (0, 0))   # VMEM-resident, untiled

    out = pl.pallas_call(
        rbf_network_kernel,
        out_shape=jax.ShapeDtypeStruct((b_pad, C), jnp.float32),
        grid=grid,
        in_specs=[
            pl.BlockSpec((tb, F), lambda i: (i, 0)),        # streamed batch tile of x
            full_spec(cbd),
            full_spec(msk),
            full_spec(csq),
            full_spec(nsig2),
            full_spec(wt),
            full_spec(b),
        ],
        out_specs=pl.BlockSpec((tb, C), lambda i: (i, 0)),  # one contiguous store per tile
        compiler_params=pltpu.CompilerParams(
            dimension_semantics=("parallel",),               # megacore-shard the batch grid
        ),
    )(x, cbd, msk, csq, nsig2, wt, b)
    return out[:B]


def reference_forward(x, centres_list, sigmas_list, w_cls, b_cls):
    """Pure-JAX mirror of the PyTorch forward (explicit sqrt, then square)."""
    f_x = []
    start = 0
    for c, s in zip(centres_list, sigmas_list):
        fi = c.shape[1]
        xs = x[:, start:start + fi]
        start += fi
        diff = xs[:, None, :] - c[None, :, :]
        dist = jnp.sqrt(jnp.sum(diff * diff, axis=-1)) * s[None, :]
        f_x.append(jnp.exp(-(dist ** 2)))
    f_x = jnp.concatenate(f_x, axis=1)
    return f_x @ w_cls.T + b_cls.reshape(1, -1)


if __name__ == "__main__":
    # Small config: n_features=[8, 8], n_hiddens=[32, 32], n_classes=16, batch=8
    B = 8
    n_features = [8, 8]
    n_hiddens = [32, 32]
    n_classes = 16

    key = jax.random.PRNGKey(0)
    k_x, k_c0, k_c1, k_w, k_b, k_x2 = jax.random.split(key, 6)

    x = jax.random.normal(k_x, (B, sum(n_features)), dtype=jnp.float32)

    # RBF layer params (centres ~ N(0,1), sigmas = 1.0, as in standard RBF init)
    centres0 = jax.random.normal(k_c0, (n_hiddens[0], n_features[0]), dtype=jnp.float32)
    centres1 = jax.random.normal(k_c1, (n_hiddens[1], n_features[1]), dtype=jnp.float32)
    sigmas0 = jnp.ones((n_hiddens[0],), dtype=jnp.float32)
    sigmas1 = jnp.ones((n_hiddens[1],), dtype=jnp.float32)

    # Classifier (Linear) params
    fan_in = sum(n_hiddens)
    bound = 1.0 / float(fan_in) ** 0.5
    w_cls = jax.random.uniform(
        k_w, (n_classes, fan_in), dtype=jnp.float32, minval=-bound, maxval=bound
    )
    b_cls = jax.random.uniform(
        k_b, (n_classes,), dtype=jnp.float32, minval=-bound, maxval=bound
    )

    params = prepare_params([centres0, centres1], [sigmas0, sigmas1], w_cls, b_cls)

    # Run 1: tiny batch (single grid step).
    out = jax.block_until_ready(rbf_network_forward(x, params))
    ref = reference_forward(x, [centres0, centres1], [sigmas0, sigmas1], w_cls, b_cls)
    assert out.shape == (B, n_classes)
    assert jnp.allclose(out, ref, rtol=1e-4, atol=1e-4), "mismatch vs reference (B=8)"

    # Run 2: batch that exercises padding + a multi-step "parallel" grid.
    B2 = 272
    x2 = jax.random.normal(k_x2, (B2, sum(n_features)), dtype=jnp.float32)
    out2 = jax.block_until_ready(rbf_network_forward(x2, params, tb=64))
    ref2 = reference_forward(x2, [centres0, centres1], [sigmas0, sigmas1], w_cls, b_cls)
    assert out2.shape == (B2, n_classes)
    assert jnp.allclose(out2, ref2, rtol=1e-4, atol=1e-4), "mismatch vs reference (B=272)"

    print("KERNEL_OK")
</pallas_src>

<mosaic_0001>
module attributes {stable_mosaic.version = 11 : i64} {
  func.func @rbf_network_kernel(%arg0: i32, %arg1: memref<8x16xf32, #tpu.memory_space<vmem>>, %arg2: memref<16x64xf32, #tpu.memory_space<vmem>>, %arg3: memref<16x64xf32, #tpu.memory_space<vmem>>, %arg4: memref<1x64xf32, #tpu.memory_space<vmem>>, %arg5: memref<1x64xf32, #tpu.memory_space<vmem>>, %arg6: memref<64x16xf32, #tpu.memory_space<vmem>>, %arg7: memref<1x16xf32, #tpu.memory_space<vmem>>, %arg8: memref<8x16xf32, #tpu.memory_space<vmem>>) attributes {dimension_semantics = [#tpu.dimension_semantics<parallel>], iteration_bounds = array<i64: 1>, scalar_prefetch = 0 : i64, scratch_operands = 0 : i64, tpu.core_type = #tpu.core_type<tc>, window_params = [{transform_indices = @transform_0, window_bounds = array<i64: 8, 16>}, {pipeline_mode = #tpu.pipeline_mode<synchronous>, transform_indices = @transform_1, window_bounds = array<i64: 16, 64>}, {pipeline_mode = #tpu.pipeline_mode<synchronous>, transform_indices = @transform_2, window_bounds = array<i64: 16, 64>}, {pipeline_mode = #tpu.pipeline_mode<synchronous>, transform_indices = @transform_3, window_bounds = array<i64: 1, 64>}, {pipeline_mode = #tpu.pipeline_mode<synchronous>, transform_indices = @transform_4, window_bounds = array<i64: 1, 64>}, {pipeline_mode = #tpu.pipeline_mode<synchronous>, transform_indices = @transform_5, window_bounds = array<i64: 64, 16>}, {pipeline_mode = #tpu.pipeline_mode<synchronous>, transform_indices = @transform_6, window_bounds = array<i64: 1, 16>}, {transform_indices = @transform_7, window_bounds = array<i64: 8, 16>}]} {
    %c0 = arith.constant 0 : index
    %c0_0 = arith.constant 0 : index
    %0 = vector.load %arg1[%c0, %c0_0] : memref<8x16xf32, #tpu.memory_space<vmem>>, vector<8x16xf32>
    %c0_1 = arith.constant 0 : index
    %c0_2 = arith.constant 0 : index
    %1 = vector.load %arg2[%c0_1, %c0_2] : memref<16x64xf32, #tpu.memory_space<vmem>>, vector<16x64xf32>
    %cst = arith.constant dense<0.000000e+00> : vector<8x64xf32>
    %2 = tpu.matmul %0, %1, %cst {dimension_numbers = #tpu.dot_dimension_numbers<[1], [0], [0], [1], [0, 0, 1, 1], [], []>} : vector<8x16xf32>, vector<16x64xf32>, vector<8x64xf32> -> vector<8x64xf32>
    %3 = arith.mulf %0, %0 : vector<8x16xf32>
    %c0_3 = arith.constant 0 : index
    %c0_4 = arith.constant 0 : index
    %4 = vector.load %arg3[%c0_3, %c0_4] : memref<16x64xf32, #tpu.memory_space<vmem>>, vector<16x64xf32>
    %cst_5 = arith.constant dense<0.000000e+00> : vector<8x64xf32>
    %5 = tpu.matmul %3, %4, %cst_5 {dimension_numbers = #tpu.dot_dimension_numbers<[1], [0], [0], [1], [0, 0, 1, 1], [], []>} : vector<8x16xf32>, vector<16x64xf32>, vector<8x64xf32> -> vector<8x64xf32>
    %6 = arith.addf %5, %2 : vector<8x64xf32>
    %c0_6 = arith.constant 0 : index
    %c0_7 = arith.constant 0 : index
    %7 = vector.load %arg4[%c0_6, %c0_7] : memref<1x64xf32, #tpu.memory_space<vmem>>, vector<1x64xf32>
    %8 = vector.broadcast %7 : vector<1x64xf32> to vector<8x64xf32>
    %9 = arith.addf %6, %8 : vector<8x64xf32>
    %cst_8 = arith.constant 0.000000e+00 : f32
    %10 = vector.broadcast %cst_8 : f32 to vector<8x64xf32>
    %11 = arith.maximumf %9, %10 : vector<8x64xf32>
    %c0_9 = arith.constant 0 : index
    %c0_10 = arith.constant 0 : index
    %12 = vector.load %arg5[%c0_9, %c0_10] : memref<1x64xf32, #tpu.memory_space<vmem>>, vector<1x64xf32>
    %13 = vector.broadcast %12 : vector<1x64xf32> to vector<8x64xf32>
    %14 = arith.mulf %13, %11 : vector<8x64xf32>
    %15 = math.exp %14 : vector<8x64xf32>
    %c0_11 = arith.constant 0 : index
    %c0_12 = arith.constant 0 : index
    %16 = vector.load %arg6[%c0_11, %c0_12] : memref<64x16xf32, #tpu.memory_space<vmem>>, vector<64x16xf32>
    %cst_13 = arith.constant dense<0.000000e+00> : vector<8x16xf32>
    %17 = tpu.matmul %15, %16, %cst_13 {dimension_numbers = #tpu.dot_dimension_numbers<[1], [0], [0], [1], [0, 0, 1, 1], [], []>} : vector<8x64xf32>, vector<64x16xf32>, vector<8x16xf32> -> vector<8x16xf32>
    %c0_14 = arith.constant 0 : index
    %c0_15 = arith.constant 0 : index
    %18 = vector.load %arg7[%c0_14, %c0_15] : memref<1x16xf32, #tpu.memory_space<vmem>>, vector<1x16xf32>
    %19 = vector.broadcast %18 : vector<1x16xf32> to vector<8x16xf32>
    %20 = arith.addf %17, %19 : vector<8x16xf32>
    %c0_16 = arith.constant 0 : index
    %c0_17 = arith.constant 0 : index
    %21 = vector.load %arg8[%c0_16, %c0_17] : memref<8x16xf32, #tpu.memory_space<vmem>>, vector<8x16xf32>
    tpu.vector_store %arg8[%c0_16, %c0_17], %20 {strides = array<i32>} : memref<8x16xf32, #tpu.memory_space<vmem>>, vector<8x16xf32>,
    return
  }
  func.func @transform_0(%arg0: i32) -> (i32, i32) {
    %c0_i32 = arith.constant 0 : i32
    %c0_i32_0 = arith.constant 0 : i32
    return %arg0, %c0_i32 : i32, i32
  }
  func.func @transform_1(%arg0: i32) -> (i32, i32) {
    %c0_i32 = arith.constant 0 : i32
    %c0_i32_0 = arith.constant 0 : i32
    %c0_i32_1 = arith.constant 0 : i32
    return %c0_i32, %c0_i32_0 : i32, i32
  }
  func.func @transform_2(%arg0: i32) -> (i32, i32) {
    %c0_i32 = arith.constant 0 : i32
    %c0_i32_0 = arith.constant 0 : i32
    %c0_i32_1 = arith.constant 0 : i32
    return %c0_i32, %c0_i32_0 : i32, i32
  }
  func.func @transform_3(%arg0: i32) -> (i32, i32) {
    %c0_i32 = arith.constant 0 : i32
    %c0_i32_0 = arith.constant 0 : i32
    %c0_i32_1 = arith.constant 0 : i32
    return %c0_i32, %c0_i32_0 : i32, i32
  }
  func.func @transform_4(%arg0: i32) -> (i32, i32) {
    %c0_i32 = arith.constant 0 : i32
    %c0_i32_0 = arith.constant 0 : i32
    %c0_i32_1 = arith.constant 0 : i32
    return %c0_i32, %c0_i32_0 : i32, i32
  }
  func.func @transform_5(%arg0: i32) -> (i32, i32) {
    %c0_i32 = arith.constant 0 : i32
    %c0_i32_0 = arith.constant 0 : i32
    %c0_i32_1 = arith.constant 0 : i32
    return %c0_i32, %c0_i32_0 : i32, i32
  }
  func.func @transform_6(%arg0: i32) -> (i32, i32) {
    %c0_i32 = arith.constant 0 : i32
    %c0_i32_0 = arith.constant 0 : i32
    %c0_i32_1 = arith.constant 0 : i32
    return %c0_i32, %c0_i32_0 : i32, i32
  }
  func.func @transform_7(%arg0: i32) -> (i32, i32) {
    %c0_i32 = arith.constant 0 : i32
    %c0_i32_0 = arith.constant 0 : i32
    return %arg0, %c0_i32 : i32, i32
  }
}

</mosaic_0001>

<llo_original>
// kernel: tpu_custom_call.1
$region0: #{tpu_custom_call.1}
  #allocation0 [shape = 'u32[]', space=smem, size = 0x4, offset = 0x4, fixed_abs, tag = 'smem constant byte address 0x4 - core index']
  #allocation1 [shape = 'u32[144,128]{1,0:T(1,128)}', space=vmem, size = 0x12000, scoped, tag = 'internal scratch']
  %s0 = inlined_call_operand.vmem [shape: f32[8,16], index: 0, kind: input, shape index: {}]
  %s1 = inlined_call_operand.vmem [shape: f32[16,64], index: 1, kind: input, shape index: {}]
  %s2 = inlined_call_operand.vmem [shape: f32[16,64], index: 2, kind: input, shape index: {}]
  %s3 = inlined_call_operand.vmem [shape: f32[1,64], index: 3, kind: input, shape index: {}]
  %s4 = inlined_call_operand.vmem [shape: f32[1,64], index: 4, kind: input, shape index: {}]
  %s5 = inlined_call_operand.vmem [shape: f32[64,16], index: 5, kind: input, shape index: {}]
  %s6 = inlined_call_operand.vmem [shape: f32[1,16], index: 6, kind: input, shape index: {}]
  %s7 = inlined_call_operand.hbm [shape: f32[8,16], index: 7, kind: output, shape index: {}]
  %s8 = sld [smem:[#allocation0]]
  $region38: #{tpu_custom_call.1} parent=0
    _
  %s10 = ssub.s32 1, %s8
  %s11 = scalar_select 0, %s10, %s8
  $region1: #{tpu_custom_call.1} parent=0
    #allocation2 [shape = 'u8[4096]{0}', space=vmem, size = 0x1000, scoped, tag = 'output window, operand 0, single buffered']
    #allocation3 [shape = 's32[1]{0}', space=sflag, size = 0x4, scoped, tag = 'scoped memory for tpu_custom_call.1']
    %12 = vsyncpa [#allocation3], 0
    // Predicated region
    $region2: #{tpu_custom_call.1} parent=1 // pred_check
      _
    $region3: #{tpu_custom_call.1} parent=1 // pred_check_branch
      %14 = sbr.rel (0) target = $region5
    $region4: #{tpu_custom_call.1} parent=1 // pred_region
      _
    $region5: #{tpu_custom_call.1} parent=1 // pred_fallthru
      _
    // Predicated region
    $region6: #{tpu_custom_call.1} parent=1 // pred_check
      _
    $region7: #{tpu_custom_call.1} parent=1 // pred_check_branch
      %16 = sbr.rel (0) target = $region9
    $region8: #{tpu_custom_call.1} parent=1 // pred_region
      _
    $region9: #{tpu_custom_call.1} parent=1 // pred_fallthru
      _
    // Predicated region
    $region10: #{tpu_custom_call.1} parent=1 // pred_check
      _
    $region11: #{tpu_custom_call.1} parent=1 // pred_check_branch
      %18 = sbr.rel (0) target = $region13
    $region12: #{tpu_custom_call.1} parent=1 // pred_region
      _
    $region13: #{tpu_custom_call.1} parent=1 // pred_fallthru
      _
    // Predicated region
    $region14: #{tpu_custom_call.1} parent=1 // pred_check
      _
    $region15: #{tpu_custom_call.1} parent=1 // pred_check_branch
      %20 = sbr.rel (0) target = $region17
    $region16: #{tpu_custom_call.1} parent=1 // pred_region
      _
    $region17: #{tpu_custom_call.1} parent=1 // pred_fallthru
      _
    // Predicated region
    $region18: #{tpu_custom_call.1} parent=1 // pred_check
      _
    $region19: #{tpu_custom_call.1} parent=1 // pred_check_branch
      %22 = sbr.rel (0) target = $region21
    $region20: #{tpu_custom_call.1} parent=1 // pred_region
      _
    $region21: #{tpu_custom_call.1} parent=1 // pred_fallthru
      _
    // Predicated region
    $region22: #{tpu_custom_call.1} parent=1 // pred_check
      _
    $region23: #{tpu_custom_call.1} parent=1 // pred_check_branch
      %24 = sbr.rel (0) target = $region25
    $region24: #{tpu_custom_call.1} parent=1 // pred_region
      _
    $region25: #{tpu_custom_call.1} parent=1 // pred_fallthru
      _
    // Predicated region
    $region26: #{tpu_custom_call.1} parent=1 // pred_check
      _
    $region27: #{tpu_custom_call.1} parent=1 // pred_check_branch
      %26 = sbr.rel (0) target = $region29
    $region28: #{tpu_custom_call.1} parent=1 // pred_region
      _
    $region29: #{tpu_custom_call.1} parent=1 // pred_fallthru
      _
    %v27 = vld [vmem:[%s0] sm:$0xff]
    %v28 = vld [vmem:[%s1] sm:$0xff]
    %v29 = vld [vmem:[%s1 + $0x8] sm:$0xff]
    %vm30 = vcmask 130048
    %v32 = vsel %vm30, %v27, 0
    %34 = vmatprep.subr.mxu0 0.0
    %35 = vmatpush1.msra.mxu0 %v28
    %36 = vmatprep.subr.mxu0 0.0
    %37 = vmatpush1.msra.mxu0 %v29
    %38 = vmatprep.subr.mxu0 0.0
    %39 = vmatpush1.msra.mxu0 0.0
    %40 = vmatprep.subr.mxu0 0.0
    %41 = vmatpush1.msra.mxu0 0.0
    %42 = vmatprep.subr.mxu0 0.0
    %43 = vmatpush1.msra.mxu0 0.0
    %44 = vmatprep.subr.mxu0 0.0
    %45 = vmatpush1.msra.mxu0 0.0
    %46 = vmatprep.subr.mxu0 0.0
    %47 = vmatpush1.msra.mxu0 0.0
    %48 = vmatprep.subr.mxu0 0.0
    %49 = vmatpush1.msra.mxu0 0.0
    %50 = vmatprep.subr.mxu0 0.0
    %51 = vmatpush1.msra.mxu0 0.0
    %52 = vmatprep.subr.mxu0 0.0
    %53 = vmatpush1.msra.mxu0 0.0
    %54 = vmatprep.subr.mxu0 0.0
    %55 = vmatpush1.msra.mxu0 0.0
    %56 = vmatprep.subr.mxu0 0.0
    %57 = vmatpush1.msra.mxu0 0.0
    %58 = vmatprep.subr.mxu0 0.0
    %59 = vmatpush1.msra.mxu0 0.0
    %60 = vmatprep.subr.mxu0 0.0
    %61 = vmatpush1.msra.mxu0 0.0
    %62 = vmatprep.subr.mxu0 0.0
    %63 = vmatpush1.msra.mxu0 0.0
    %64 = vmatprep.subr.mxu0 0.0
    %65 = vmatpush1.msra.mxu0 0.0
    %66 = vmatprep.subr.mxu0 0.0
    %67 = vmatpush1.msra.mxu0 0.0
    %68 = vmatprep.subr.mxu0 0.0
    %69 = vmatpush1.msra.mxu0 0.0
    %70 = vmatprep.subr.mxu0 0.0
    %71 = vmatpush1.msra.mxu0 0.0
    %72 = vmatprep.subr.mxu0 0.0
    %73 = vmatpush1.msra.mxu0 0.0
    %74 = vmatprep.subr.mxu0 0.0
    %75 = vmatpush1.msra.mxu0 0.0
    %76 = vmatprep.subr.mxu0 0.0
    %77 = vmatpush1.msra.mxu0 0.0
    %78 = vmatprep.subr.mxu0 0.0
    %79 = vmatpush1.msra.mxu0 0.0
    %80 = vmatprep.subr.mxu0 0.0
    %81 = vmatpush1.msra.mxu0 0.0
    %82 = vmatprep.subr.mxu0 0.0
    %83 = vmatpush1.msra.mxu0 0.0
    %84 = vmatprep.subr.mxu0 0.0
    %85 = vmatpush1.msra.mxu0 0.0
    %86 = vmatprep.subr.mxu0 0.0
    %87 = vmatpush1.msra.mxu0 0.0
    %88 = vmatprep.subr.mxu0 0.0
    %89 = vmatpush1.msra.mxu0 0.0
    %90 = vmatprep.subr.mxu0 0.0
    %91 = vmatpush1.msra.mxu0 0.0
    %92 = vmatprep.subr.mxu0 0.0
    %93 = vmatpush1.msra.mxu0 0.0
    %94 = vmatprep.subr.mxu0 0.0
    %95 = vmatpush1.msra.mxu0 0.0
    %96 = vmatprep.subr.mxu0 0.0
    %97 = vmatpush1.msra.mxu0 0.0
    %98 = vmatprep.mubr.f32.mxu0 0.0
    %99 = vmatmul.mubr.f32.gmra.mrb[0].mxu0 %v32
    %v100 = vpop.f32.mrb[0].mxu0
    %v101 = vadd.f32 0.0, %v100
    %v102 = vpop.f32.mrb[0].mxu0
    %103 = vdwg.mxu0
    %v104 = vmul.f32 %v27, %v27
    %v105 = vld [vmem:[%s2] sm:$0xff]
    %v106 = vld [vmem:[%s2 + $0x8] sm:$0xff]
    %v108 = vsel %vm30, %v104, 0
    %110 = vmatprep.subr.mxu0 0.0
    %111 = vmatpush1.msra.mxu0 %v105
    %112 = vmatprep.subr.mxu0 0.0
    %113 = vmatpush1.msra.mxu0 %v106
    %114 = vmatprep.subr.mxu0 0.0
    %115 = vmatpush1.msra.mxu0 0.0
    %116 = vmatprep.subr.mxu0 0.0
    %117 = vmatpush1.msra.mxu0 0.0
    %118 = vmatprep.subr.mxu0 0.0
    %119 = vmatpush1.msra.mxu0 0.0
    %120 = vmatprep.subr.mxu0 0.0
    %121 = vmatpush1.msra.mxu0 0.0
    %122 = vmatprep.subr.mxu0 0.0
    %123 = vmatpush1.msra.mxu0 0.0
    %124 = vmatprep.subr.mxu0 0.0
    %125 = vmatpush1.msra.mxu0 0.0
    %126 = vmatprep.subr.mxu0 0.0
    %127 = vmatpush1.msra.mxu0 0.0
    %128 = vmatprep.subr.mxu0 0.0
    %129 = vmatpush1.msra.mxu0 0.0
    %130 = vmatprep.subr.mxu0 0.0
    %131 = vmatpush1.msra.mxu0 0.0
    %132 = vmatprep.subr.mxu0 0.0
    %133 = vmatpush1.msra.mxu0 0.0
    %134 = vmatprep.subr.mxu0 0.0
    %135 = vmatpush1.msra.mxu0 0.0
    %136 = vmatprep.subr.mxu0 0.0
    %137 = vmatpush1.msra.mxu0 0.0
    %138 = vmatprep.subr.mxu0 0.0
    %139 = vmatpush1.msra.mxu0 0.0
    %140 = vmatprep.subr.mxu0 0.0
    %141 = vmatpush1.msra.mxu0 0.0
    %142 = vmatprep.subr.mxu0 0.0
    %143 = vmatpush1.msra.mxu0 0.0
    %144 = vmatprep.subr.mxu0 0.0
    %145 = vmatpush1.msra.mxu0 0.0
    %146 = vmatprep.subr.mxu0 0.0
    %147 = vmatpush1.msra.mxu0 0.0
    %148 = vmatprep.subr.mxu0 0.0
    %149 = vmatpush1.msra.mxu0 0.0
    %150 = vmatprep.subr.mxu0 0.0
    %151 = vmatpush1.msra.mxu0 0.0
    %152 = vmatprep.subr.mxu0 0.0
    %153 = vmatpush1.msra.mxu0 0.0
    %154 = vmatprep.subr.mxu0 0.0
    %155 = vmatpush1.msra.mxu0 0.0
    %156 = vmatprep.subr.mxu0 0.0
    %157 = vmatpush1.msra.mxu0 0.0
    %158 = vmatprep.subr.mxu0 0.0
    %159 = vmatpush1.msra.mxu0 0.0
    %160 = vmatprep.subr.mxu0 0.0
    %161 = vmatpush1.msra.mxu0 0.0
    %162 = vmatprep.subr.mxu0 0.0
    %163 = vmatpush1.msra.mxu0 0.0
    %164 = vmatprep.subr.mxu0 0.0
    %165 = vmatpush1.msra.mxu0 0.0
    %166 = vmatprep.subr.mxu0 0.0
    %167 = vmatpush1.msra.mxu0 0.0
    %168 = vmatprep.subr.mxu0 0.0
    %169 = vmatpush1.msra.mxu0 0.0
    %170 = vmatprep.subr.mxu0 0.0
    %171 = vmatpush1.msra.mxu0 0.0
    %172 = vmatprep.subr.mxu0 0.0
    %173 = vmatpush1.msra.mxu0 0.0
    %174 = vmatprep.mubr.f32.mxu0 0.0
    %175 = vmatmul.mubr.f32.gmra.mrb[0].mxu0 %v108
    %v176 = vpop.f32.mrb[0].mxu0
    %v177 = vadd.f32 %v101, %v176
    %v178 = vpop.f32.mrb[0].mxu0
    %179 = vdwg.mxu0
    %v180 = vld [vmem:[%s3] sm:$0x1]
    %v182 = vlaneseq
    %v183 = vshrl.u32 %v182, 7
    %v184 = vsub.s32 0, %v183
    %v185 = vrot.slane %v180, %v184
    %v187 = vadd.f32 %v177, %v185
    %v188 = vmax.f32 %v187, 0.0
    %v189 = vld [vmem:[%s4] sm:$0x1]
    %v191 = vlaneseq
    %v192 = vshrl.u32 %v191, 7
    %v193 = vsub.s32 0, %v192
    %v194 = vrot.slane %v189, %v193
    %v196 = vmul.f32 %v194, %v188
    %v197 = vmul.f32 %v196, 1.442695
    %v198 = vpow.pop %v197
    %v199 = vld [vmem:[%s5] sm:$0xff]
    %v200 = vld [vmem:[%s5 + $0x8] sm:$0xff]
    %v201 = vld [vmem:[%s5 + $0x10] sm:$0xff]
    %v202 = vld [vmem:[%s5 + $0x18] sm:$0xff]
    %v203 = vld [vmem:[%s5 + $0x20] sm:$0xff]
    %v204 = vld [vmem:[%s5 + $0x28] sm:$0xff]
    %v205 = vld [vmem:[%s5 + $0x30] sm:$0xff]
    %v206 = vld [vmem:[%s5 + $0x38] sm:$0xff]
    %v207 = vld [vmem:[%s6] sm:$0x1]
    %v209 = vlaneseq
    %v210 = vshrl.u32 %v209, 7
    %v211 = vsub.s32 0, %v210
    %v212 = vrot.slane %v207, %v211
    %vm214 = vcmask 523264
    %v216 = vsel %vm214, %v198, 0
    %218 = vmatprep.subr.mxu0 0.0
    %219 = vmatpush1.msra.mxu0 %v199
    %220 = vmatprep.subr.mxu0 0.0
    %221 = vmatpush1.msra.mxu0 %v200
    %222 = vmatprep.subr.mxu0 0.0
    %223 = vmatpush1.msra.mxu0 %v201
    %224 = vmatprep.subr.mxu0 0.0
    %225 = vmatpush1.msra.mxu0 %v202
    %226 = vmatprep.subr.mxu0 0.0
    %227 = vmatpush1.msra.mxu0 %v203
    %228 = vmatprep.subr.mxu0 0.0
    %229 = vmatpush1.msra.mxu0 %v204
    %230 = vmatprep.subr.mxu0 0.0
    %231 = vmatpush1.msra.mxu0 %v205
    %232 = vmatprep.subr.mxu0 0.0
    %233 = vmatpush1.msra.mxu0 %v206
    %234 = vmatprep.subr.mxu0 0.0
    %235 = vmatpush1.msra.mxu0 0.0
    %236 = vmatprep.subr.mxu0 0.0
    %237 = vmatpush1.msra.mxu0 0.0
    %238 = vmatprep.subr.mxu0 0.0
    %239 = vmatpush1.msra.mxu0 0.0
    %240 = vmatprep.subr.mxu0 0.0
    %241 = vmatpush1.msra.mxu0 0.0
    %242 = vmatprep.subr.mxu0 0.0
    %243 = vmatpush1.msra.mxu0 0.0
    %244 = vmatprep.subr.mxu0 0.0
    %245 = vmatpush1.msra.mxu0 0.0
    %246 = vmatprep.subr.mxu0 0.0
    %247 = vmatpush1.msra.mxu0 0.0
    %248 = vmatprep.subr.mxu0 0.0
    %249 = vmatpush1.msra.mxu0 0.0
    %250 = vmatprep.subr.mxu0 0.0
    %251 = vmatpush1.msra.mxu0 0.0
    %252 = vmatprep.subr.mxu0 0.0
    %253 = vmatpush1.msra.mxu0 0.0
    %254 = vmatprep.subr.mxu0 0.0
    %255 = vmatpush1.msra.mxu0 0.0
    %256 = vmatprep.subr.mxu0 0.0
    %257 = vmatpush1.msra.mxu0 0.0
    %258 = vmatprep.subr.mxu0 0.0
    %259 = vmatpush1.msra.mxu0 0.0
    %260 = vmatprep.subr.mxu0 0.0
    %261 = vmatpush1.msra.mxu0 0.0
    %262 = vmatprep.subr.mxu0 0.0
    %263 = vmatpush1.msra.mxu0 0.0
    %264 = vmatprep.subr.mxu0 0.0
    %265 = vmatpush1.msra.mxu0 0.0
    %266 = vmatprep.subr.mxu0 0.0
    %267 = vmatpush1.msra.mxu0 0.0
    %268 = vmatprep.subr.mxu0 0.0
    %269 = vmatpush1.msra.mxu0 0.0
    %270 = vmatprep.subr.mxu0 0.0
    %271 = vmatpush1.msra.mxu0 0.0
    %272 = vmatprep.subr.mxu0 0.0
    %273 = vmatpush1.msra.mxu0 0.0
    %274 = vmatprep.subr.mxu0 0.0
    %275 = vmatpush1.msra.mxu0 0.0
    %276 = vmatprep.subr.mxu0 0.0
    %277 = vmatpush1.msra.mxu0 0.0
    %278 = vmatprep.subr.mxu0 0.0
    %279 = vmatpush1.msra.mxu0 0.0
    %280 = vmatprep.subr.mxu0 0.0
    %281 = vmatpush1.msra.mxu0 0.0
    %282 = vmatprep.mubr.f32.mxu0 0.0
    %283 = vmatmul.mubr.f32.gmra.mrb[0].mxu0 %v216
    %v284 = vpop.f32.mrb[0].mxu0
    %v285 = vadd.f32 %v212, %v284
    %v286 = vpop.f32.mrb[0].mxu0
    %287 = vdwg.mxu0
    %288 = vst.msk [vmem:[#allocation2] sm:$0xff] %vm30, %v285
    // Predicated region
    $region30: #{tpu_custom_call.1} parent=1 // pred_check
      _
    $region31: #{tpu_custom_call.1} parent=1 // pred_check_branch
      %290 = sbr.rel (0) target = $region33
    $region32: #{tpu_custom_call.1} parent=1 // pred_region
      %s292 = ssub.s32 128, 128
      %293 = vsyncadd [#allocation3], %s292
      %s295 = sshll.u32 [#allocation2], 4
      %s296 = int_to_ptr.vmem [resolvable:$true] %s295
      %298 = dma.vmem_to_hbm [thread:$0]  %s296, 128, %s7, [#allocation3]
    $region33: #{tpu_custom_call.1} parent=1 // pred_fallthru
      _
    // Predicated region
    $region34: #{tpu_custom_call.1} parent=1 // pred_check
      _
    $region35: #{tpu_custom_call.1} parent=1 // pred_check_branch
      %300 = sbr.rel (0) target = $region37
    $region36: #{tpu_custom_call.1} parent=1 // pred_region
      %301 = dma.done [#allocation3], 128
    $region37: #{tpu_custom_call.1} parent=1 // pred_fallthru
      _
    %302 = vsyncpa [#allocation3], 1

</llo_original>
